<compile_context>
chip_gen: v5e
topology: v5e:2x2
jax: 0.10.0
libtpu: 0.0.40
codegen_flags: <defaults>
</compile_context>

<pallas_src>
import functools

import numpy as np
import jax
import jax.numpy as jnp
from jax import lax
from jax.experimental import pallas as pl
from jax.experimental.pallas import tpu as pltpu


# ------------------------------ Pallas kernel -------------------------------

def _fused_agg_kernel(xc_ref, w1_ref, s1_ref, b1_ref, mask_ref, w2_ref,
                      s2_ref, b2_ref, o_ref):
    # xc_ref  : (B*P1, 9*c_in)      bf16  im2col'ed input (all batches, all taps)
    # w1_ref  : (9*c_in, n_r*c_mid) bf16  conv1 weights, branches fused on N
    # s1_ref/b1_ref: (1, n_r*c_mid) f32   folded BN1 scale / bias
    # mask_ref: (9, B, B*P1)        bf16  per-tap, per-batch block-diag 0/1 masks
    # w2_ref  : (9, n_r*c_mid, NP)  bf16  per-tap block-diagonal conv2 weights
    # s2_ref/b2_ref: (1, NP)        f32   folded BN2 scale (incl. 1/P2) / bias
    # o_ref   : (B, NP)             f32   pooled output (lane-padded to NP)

    # ---- stage 1: conv1 (im2col done wrapper-side) + BN1 + Swish, one matmul
    y1 = jnp.dot(xc_ref[...], w1_ref[...], preferred_element_type=jnp.float32)
    y1 = y1 * s1_ref[...] + b1_ref[...]
    # Swish: x * sigmoid(x); reciprocal on the EUP slot (approx is plenty here).
    y1 = y1 * pl.reciprocal(1.0 + jnp.exp(-y1), approx=True)
    y1b = y1.astype(jnp.bfloat16)

    # ---- stage 2: conv2 + BN2 + global avg pool (pool commuted with conv2) ----
    # Per tap k: a constant 0/1 mask matmul (MXU) sums the stride-2 stage-1
    # positions this tap touches per batch element, then a tiny matmul applies
    # the block-diagonal conv2 weights; taps accumulate in f32 vregs.
    n_taps = mask_ref.shape[0]
    acc = None
    for k in range(n_taps):                       # static unroll, 9 taps
        t_k = jnp.dot(mask_ref[k], y1b, preferred_element_type=jnp.float32)
        c_k = jnp.dot(t_k.astype(jnp.bfloat16), w2_ref[k],
                      preferred_element_type=jnp.float32)
        acc = c_k if acc is None else acc + c_k
    o_ref[...] = acc * s2_ref[...] + b2_ref[...]


# -------------------------- one-time parameter prep --------------------------

def prepare_params(params, batch, H, W, eps=1e-5):
    """Host-side, one-time preprocessing of weights/BN stats/pooling masks."""
    w1 = np.asarray(params["w1"], np.float32)   # (n_r, c_mid, c_in, 3, 3) OIHW
    w2 = np.asarray(params["w2"], np.float32)   # (n_r, c_out, c_mid, 3, 3)
    n_r, c_mid, c_in = w1.shape[0], w1.shape[1], w1.shape[2]
    c_out = w2.shape[1]

    Ho1, Wo1 = (H - 1) // 2 + 1, (W - 1) // 2 + 1       # conv1 output size
    Ho2, Wo2 = (Ho1 - 1) // 2 + 1, (Wo1 - 1) // 2 + 1   # conv2 output size
    P1 = Ho1 * Wo1
    CM, NRC = n_r * c_mid, n_r * c_out
    NP = ((NRC + 127) // 128) * 128                      # lane-pad output N

    def fold(g, be, m, v):
        s = np.asarray(g, np.float32) / np.sqrt(np.asarray(v, np.float32) + eps)
        return s, np.asarray(be, np.float32) - np.asarray(m, np.float32) * s

    s1, b1 = fold(params["g1"], params["be1"], params["m1"], params["v1"])
    s2, b2 = fold(params["g2"], params["be2"], params["m2"], params["v2"])

    # conv1 weights -> (9*c_in, n_r*c_mid); K index = tap*c_in + c (matches im2col).
    w1k = np.transpose(w1, (3, 4, 2, 0, 1)).reshape(9 * c_in, CM)

    # conv2 weights -> per-tap block-diagonal over branches: (9, CM, NP).
    w2t = np.transpose(w2, (3, 4, 0, 2, 1)).reshape(9, n_r, c_mid, c_out)
    w2bd = np.zeros((9, CM, NP), np.float32)
    for r in range(n_r):
        w2bd[:, r * c_mid:(r + 1) * c_mid, r * c_out:(r + 1) * c_out] = w2t[:, r]

    # Constant pooling masks: for every conv2 tap (kh,kw), which stride-2
    # stage-1 positions it touches (padding rows/cols simply drop out).
    mask9 = np.zeros((9, Ho1, Wo1), np.float32)
    for kh in range(3):
        for kw in range(3):
            for i2 in range(Ho2):
                for j2 in range(Wo2):
                    i, j = 2 * i2 + kh - 1, 2 * j2 + kw - 1
                    if 0 <= i < Ho1 and 0 <= j < Wo1:
                        mask9[kh * 3 + kw, i, j] = 1.0
    mask9 = mask9.reshape(9, P1)
    maskT = np.zeros((9, batch, batch * P1), np.float32)   # per-batch block diag
    for b in range(batch):
        maskT[:, b, b * P1:(b + 1) * P1] = mask9

    # BN2 scale absorbs the 1/P2 of the average pool; pad scale/bias to NP.
    s2p = np.zeros((1, NP), np.float32)
    b2p = np.zeros((1, NP), np.float32)
    s2p[0, :NRC] = s2.reshape(-1) / float(Ho2 * Wo2)
    b2p[0, :NRC] = b2.reshape(-1)

    return {
        "w1k": jnp.asarray(w1k, jnp.bfloat16),
        "s1f": jnp.asarray(s1.reshape(1, CM), jnp.float32),
        "b1f": jnp.asarray(b1.reshape(1, CM), jnp.float32),
        "mask": jnp.asarray(maskT, jnp.bfloat16),
        "w2bd": jnp.asarray(w2bd, jnp.bfloat16),
        "s2f": jnp.asarray(s2p, jnp.float32),
        "b2f": jnp.asarray(b2p, jnp.float32),
    }


# -------------------------------- JAX forward --------------------------------

def pool_aggregate(x_nchw, prep, *, n_r, c_out):
    B, c_in, H, W = x_nchw.shape
    Ho1, Wo1 = (H - 1) // 2 + 1, (W - 1) // 2 + 1
    P1 = Ho1 * Wo1
    CM = prep["w1k"].shape[1]
    NP = prep["s2f"].shape[1]

    # NCHW -> NHWC, pad 1, wrapper-side im2col for conv1 (3x3, stride 2, pad 1).
    x = jnp.transpose(x_nchw, (0, 2, 3, 1)).astype(jnp.float32)
    xp = jnp.pad(x, ((0, 0), (1, 1), (1, 1), (0, 0)))
    taps = [xp[:, kh:kh + 2 * Ho1 - 1:2, kw:kw + 2 * Wo1 - 1:2, :]
            for kh in range(3) for kw in range(3)]
    xc = jnp.stack(taps, axis=3).reshape(B * P1, 9 * c_in).astype(jnp.bfloat16)

    out = pl.pallas_call(
        _fused_agg_kernel,
        out_shape=jax.ShapeDtypeStruct((B, NP), jnp.float32),
        grid=(1,),
        in_specs=[
            pl.BlockSpec((B * P1, 9 * c_in), lambda i: (0, 0)),
            pl.BlockSpec((9 * c_in, CM), lambda i: (0, 0)),
            pl.BlockSpec((1, CM), lambda i: (0, 0)),
            pl.BlockSpec((1, CM), lambda i: (0, 0)),
            pl.BlockSpec((9, B, B * P1), lambda i: (0, 0, 0)),
            pl.BlockSpec((9, CM, NP), lambda i: (0, 0, 0)),
            pl.BlockSpec((1, NP), lambda i: (0, 0)),
            pl.BlockSpec((1, NP), lambda i: (0, 0)),
        ],
        out_specs=pl.BlockSpec((B, NP), lambda i: (0, 0)),
        compiler_params=pltpu.CompilerParams(
            dimension_semantics=("arbitrary",)),
    )(xc, prep["w1k"], prep["s1f"], prep["b1f"], prep["mask"],
      prep["w2bd"], prep["s2f"], prep["b2f"])

    return out[:, :n_r * c_out].reshape(B, n_r, c_out)


# ----------------------------- pure-JAX reference ----------------------------

def _ref_pool_aggregate(x_nchw, params, eps=1e-5):
    x = jnp.transpose(x_nchw, (0, 2, 3, 1)).astype(jnp.float32)
    w1, w2 = params["w1"], params["w2"]
    n_r = w1.shape[0]
    outs = []
    for r in range(n_r):
        y = lax.conv_general_dilated(
            x, jnp.transpose(w1[r], (2, 3, 1, 0)), (2, 2), ((1, 1), (1, 1)),
            dimension_numbers=("NHWC", "HWIO", "NHWC"))
        y = (y - params["m1"][r]) / jnp.sqrt(params["v1"][r] + eps) * params["g1"][r] + params["be1"][r]
        y = y * jax.nn.sigmoid(y)
        y = lax.conv_general_dilated(
            y, jnp.transpose(w2[r], (2, 3, 1, 0)), (2, 2), ((1, 1), (1, 1)),
            dimension_numbers=("NHWC", "HWIO", "NHWC"))
        y = (y - params["m2"][r]) / jnp.sqrt(params["v2"][r] + eps) * params["g2"][r] + params["be2"][r]
        outs.append(jnp.mean(y, axis=(1, 2))[:, None, :])   # (B, 1, C_out)
    return jnp.concatenate(outs, axis=1)


# ---------------------------------- main -------------------------------------

if __name__ == "__main__":
    key = jax.random.PRNGKey(0)
    B, C_in, H, W = 2, 4, 16, 16
    n_r, d_mid, d_out = 3, 8, 16

    ks = jax.random.split(key, 11)
    x = jax.random.normal(ks[0], (B, C_in, H, W), jnp.float32)
    params = {
        "w1": 0.1 * jax.random.normal(ks[1], (n_r, d_mid, C_in, 3, 3), jnp.float32),
        "w2": 0.1 * jax.random.normal(ks[2], (n_r, d_out, d_mid, 3, 3), jnp.float32),
        "g1": 1.0 + 0.1 * jax.random.normal(ks[3], (n_r, d_mid), jnp.float32),
        "be1": 0.1 * jax.random.normal(ks[4], (n_r, d_mid), jnp.float32),
        "m1": 0.1 * jax.random.normal(ks[5], (n_r, d_mid), jnp.float32),
        "v1": 0.5 + jax.random.uniform(ks[6], (n_r, d_mid), jnp.float32),
        "g2": 1.0 + 0.1 * jax.random.normal(ks[7], (n_r, d_out), jnp.float32),
        "be2": 0.1 * jax.random.normal(ks[8], (n_r, d_out), jnp.float32),
        "m2": 0.1 * jax.random.normal(ks[9], (n_r, d_out), jnp.float32),
        "v2": 0.5 + jax.random.uniform(ks[10], (n_r, d_out), jnp.float32),
    }

    prep = prepare_params(params, B, H, W)                       # one-time prep
    fwd = jax.jit(functools.partial(pool_aggregate, n_r=n_r, c_out=d_out))

    out = jax.block_until_ready(fwd(x, prep))
    ref = jax.block_until_ready(_ref_pool_aggregate(x, params))

    assert out.shape == (B, n_r, d_out), out.shape
    # All MXU operands are bf16 (single-pass MXU) with f32 accumulation; keep a
    # relaxed tolerance vs the f32 reference. Structural bugs would be >> 1e-1.
    if not jnp.allclose(out, ref, atol=1e-2, rtol=1e-2):
        raise AssertionError(
            f"mismatch vs reference, max abs diff = {float(jnp.max(jnp.abs(out - ref)))}")
    print("KERNEL_OK")
</pallas_src>

<mosaic_0001>
module attributes {stable_mosaic.version = 11 : i64} {
  func.func @_fused_agg_kernel(%arg0: i32, %arg1: memref<128x36xbf16, #tpu.memory_space<vmem>>, %arg2: memref<36x24xbf16, #tpu.memory_space<vmem>>, %arg3: memref<1x24xf32, #tpu.memory_space<vmem>>, %arg4: memref<1x24xf32, #tpu.memory_space<vmem>>, %arg5: memref<9x2x128xbf16, #tpu.memory_space<vmem>>, %arg6: memref<9x24x128xbf16, #tpu.memory_space<vmem>>, %arg7: memref<1x128xf32, #tpu.memory_space<vmem>>, %arg8: memref<1x128xf32, #tpu.memory_space<vmem>>, %arg9: memref<2x128xf32, #tpu.memory_space<vmem>>) attributes {dimension_semantics = [#tpu.dimension_semantics<arbitrary>], iteration_bounds = array<i64: 1>, scalar_prefetch = 0 : i64, scratch_operands = 0 : i64, tpu.core_type = #tpu.core_type<tc>, window_params = [{pipeline_mode = #tpu.pipeline_mode<synchronous>, transform_indices = @transform_0, window_bounds = array<i64: 128, 36>}, {pipeline_mode = #tpu.pipeline_mode<synchronous>, transform_indices = @transform_1, window_bounds = array<i64: 36, 24>}, {pipeline_mode = #tpu.pipeline_mode<synchronous>, transform_indices = @transform_2, window_bounds = array<i64: 1, 24>}, {pipeline_mode = #tpu.pipeline_mode<synchronous>, transform_indices = @transform_3, window_bounds = array<i64: 1, 24>}, {pipeline_mode = #tpu.pipeline_mode<synchronous>, transform_indices = @transform_4, window_bounds = array<i64: 9, 2, 128>}, {pipeline_mode = #tpu.pipeline_mode<synchronous>, transform_indices = @transform_5, window_bounds = array<i64: 9, 24, 128>}, {pipeline_mode = #tpu.pipeline_mode<synchronous>, transform_indices = @transform_6, window_bounds = array<i64: 1, 128>}, {pipeline_mode = #tpu.pipeline_mode<synchronous>, transform_indices = @transform_7, window_bounds = array<i64: 1, 128>}, {pipeline_mode = #tpu.pipeline_mode<synchronous>, transform_indices = @transform_8, window_bounds = array<i64: 2, 128>}]} {
    %c0 = arith.constant 0 : index
    %c0_0 = arith.constant 0 : index
    %0 = vector.load %arg1[%c0, %c0_0] : memref<128x36xbf16, #tpu.memory_space<vmem>>, vector<128x36xbf16>
    %c0_1 = arith.constant 0 : index
    %c0_2 = arith.constant 0 : index
    %1 = vector.load %arg2[%c0_1, %c0_2] : memref<36x24xbf16, #tpu.memory_space<vmem>>, vector<36x24xbf16>
    %cst = arith.constant dense<0.000000e+00> : vector<128x24xf32>
    %2 = tpu.matmul %0, %1, %cst {dimension_numbers = #tpu.dot_dimension_numbers<[1], [0], [0], [1], [0, 0, 1, 1], [], []>} : vector<128x36xbf16>, vector<36x24xbf16>, vector<128x24xf32> -> vector<128x24xf32>
    %c0_3 = arith.constant 0 : index
    %c0_4 = arith.constant 0 : index
    %3 = vector.load %arg3[%c0_3, %c0_4] : memref<1x24xf32, #tpu.memory_space<vmem>>, vector<1x24xf32>
    %4 = vector.broadcast %3 : vector<1x24xf32> to vector<128x24xf32>
    %5 = arith.mulf %2, %4 : vector<128x24xf32>
    %c0_5 = arith.constant 0 : index
    %c0_6 = arith.constant 0 : index
    %6 = vector.load %arg4[%c0_5, %c0_6] : memref<1x24xf32, #tpu.memory_space<vmem>>, vector<1x24xf32>
    %7 = vector.broadcast %6 : vector<1x24xf32> to vector<128x24xf32>
    %8 = arith.addf %5, %7 : vector<128x24xf32>
    %cst_7 = arith.constant 0.000000e+00 : f32
    %9 = vector.broadcast %cst_7 : f32 to vector<128x24xf32>
    %10 = arith.subf %9, %8 : vector<128x24xf32>
    %11 = math.exp %10 : vector<128x24xf32>
    %cst_8 = arith.constant 1.000000e+00 : f32
    %12 = vector.broadcast %cst_8 : f32 to vector<128x24xf32>
    %13 = arith.addf %12, %11 : vector<128x24xf32>
    %14 = tpu.reciprocal %13 {approx = true} : vector<128x24xf32> -> vector<128x24xf32>
    %15 = arith.mulf %8, %14 : vector<128x24xf32>
    %16 = arith.truncf %15 : vector<128x24xf32> to vector<128x24xbf16>
    %c0_9 = arith.constant 0 : index
    %c0_10 = arith.constant 0 : index
    %c0_11 = arith.constant 0 : index
    %17 = vector.load %arg5[%c0_9, %c0_10, %c0_11] : memref<9x2x128xbf16, #tpu.memory_space<vmem>>, vector<1x2x128xbf16>
    %18 = vector.shape_cast %17 : vector<1x2x128xbf16> to vector<2x128xbf16>
    %cst_12 = arith.constant dense<0.000000e+00> : vector<2x24xf32>
    %19 = tpu.matmul %18, %16, %cst_12 {dimension_numbers = #tpu.dot_dimension_numbers<[1], [0], [0], [1], [0, 0, 1, 1], [], []>} : vector<2x128xbf16>, vector<128x24xbf16>, vector<2x24xf32> -> vector<2x24xf32>
    %20 = arith.truncf %19 : vector<2x24xf32> to vector<2x24xbf16>
    %c0_13 = arith.constant 0 : index
    %c0_14 = arith.constant 0 : index
    %c0_15 = arith.constant 0 : index
    %21 = vector.load %arg6[%c0_13, %c0_14, %c0_15] : memref<9x24x128xbf16, #tpu.memory_space<vmem>>, vector<1x24x128xbf16>
    %22 = vector.shape_cast %21 : vector<1x24x128xbf16> to vector<24x128xbf16>
    %cst_16 = arith.constant dense<0.000000e+00> : vector<2x128xf32>
    %23 = tpu.matmul %20, %22, %cst_16 {dimension_numbers = #tpu.dot_dimension_numbers<[1], [0], [0], [1], [0, 0, 1, 1], [], []>} : vector<2x24xbf16>, vector<24x128xbf16>, vector<2x128xf32> -> vector<2x128xf32>
    %c1 = arith.constant 1 : index
    %c0_17 = arith.constant 0 : index
    %c0_18 = arith.constant 0 : index
    %24 = vector.load %arg5[%c1, %c0_17, %c0_18] : memref<9x2x128xbf16, #tpu.memory_space<vmem>>, vector<1x2x128xbf16>
    %25 = vector.shape_cast %24 : vector<1x2x128xbf16> to vector<2x128xbf16>
    %cst_19 = arith.constant dense<0.000000e+00> : vector<2x24xf32>
    %26 = tpu.matmul %25, %16, %cst_19 {dimension_numbers = #tpu.dot_dimension_numbers<[1], [0], [0], [1], [0, 0, 1, 1], [], []>} : vector<2x128xbf16>, vector<128x24xbf16>, vector<2x24xf32> -> vector<2x24xf32>
    %27 = arith.truncf %26 : vector<2x24xf32> to vector<2x24xbf16>
    %c1_20 = arith.constant 1 : index
    %c0_21 = arith.constant 0 : index
    %c0_22 = arith.constant 0 : index
    %28 = vector.load %arg6[%c1_20, %c0_21, %c0_22] : memref<9x24x128xbf16, #tpu.memory_space<vmem>>, vector<1x24x128xbf16>
    %29 = vector.shape_cast %28 : vector<1x24x128xbf16> to vector<24x128xbf16>
    %cst_23 = arith.constant dense<0.000000e+00> : vector<2x128xf32>
    %30 = tpu.matmul %27, %29, %cst_23 {dimension_numbers = #tpu.dot_dimension_numbers<[1], [0], [0], [1], [0, 0, 1, 1], [], []>} : vector<2x24xbf16>, vector<24x128xbf16>, vector<2x128xf32> -> vector<2x128xf32>
    %31 = arith.addf %23, %30 : vector<2x128xf32>
    %c2 = arith.constant 2 : index
    %c0_24 = arith.constant 0 : index
    %c0_25 = arith.constant 0 : index
    %32 = vector.load %arg5[%c2, %c0_24, %c0_25] : memref<9x2x128xbf16, #tpu.memory_space<vmem>>, vector<1x2x128xbf16>
    %33 = vector.shape_cast %32 : vector<1x2x128xbf16> to vector<2x128xbf16>
    %cst_26 = arith.constant dense<0.000000e+00> : vector<2x24xf32>
    %34 = tpu.matmul %33, %16, %cst_26 {dimension_numbers = #tpu.dot_dimension_numbers<[1], [0], [0], [1], [0, 0, 1, 1], [], []>} : vector<2x128xbf16>, vector<128x24xbf16>, vector<2x24xf32> -> vector<2x24xf32>
    %35 = arith.truncf %34 : vector<2x24xf32> to vector<2x24xbf16>
    %c2_27 = arith.constant 2 : index
    %c0_28 = arith.constant 0 : index
    %c0_29 = arith.constant 0 : index
    %36 = vector.load %arg6[%c2_27, %c0_28, %c0_29] : memref<9x24x128xbf16, #tpu.memory_space<vmem>>, vector<1x24x128xbf16>
    %37 = vector.shape_cast %36 : vector<1x24x128xbf16> to vector<24x128xbf16>
    %cst_30 = arith.constant dense<0.000000e+00> : vector<2x128xf32>
    %38 = tpu.matmul %35, %37, %cst_30 {dimension_numbers = #tpu.dot_dimension_numbers<[1], [0], [0], [1], [0, 0, 1, 1], [], []>} : vector<2x24xbf16>, vector<24x128xbf16>, vector<2x128xf32> -> vector<2x128xf32>
    %39 = arith.addf %31, %38 : vector<2x128xf32>
    %c3 = arith.constant 3 : index
    %c0_31 = arith.constant 0 : index
    %c0_32 = arith.constant 0 : index
    %40 = vector.load %arg5[%c3, %c0_31, %c0_32] : memref<9x2x128xbf16, #tpu.memory_space<vmem>>, vector<1x2x128xbf16>
    %41 = vector.shape_cast %40 : vector<1x2x128xbf16> to vector<2x128xbf16>
    %cst_33 = arith.constant dense<0.000000e+00> : vector<2x24xf32>
    %42 = tpu.matmul %41, %16, %cst_33 {dimension_numbers = #tpu.dot_dimension_numbers<[1], [0], [0], [1], [0, 0, 1, 1], [], []>} : vector<2x128xbf16>, vector<128x24xbf16>, vector<2x24xf32> -> vector<2x24xf32>
    %43 = arith.truncf %42 : vector<2x24xf32> to vector<2x24xbf16>
    %c3_34 = arith.constant 3 : index
    %c0_35 = arith.constant 0 : index
    %c0_36 = arith.constant 0 : index
    %44 = vector.load %arg6[%c3_34, %c0_35, %c0_36] : memref<9x24x128xbf16, #tpu.memory_space<vmem>>, vector<1x24x128xbf16>
    %45 = vector.shape_cast %44 : vector<1x24x128xbf16> to vector<24x128xbf16>
    %cst_37 = arith.constant dense<0.000000e+00> : vector<2x128xf32>
    %46 = tpu.matmul %43, %45, %cst_37 {dimension_numbers = #tpu.dot_dimension_numbers<[1], [0], [0], [1], [0, 0, 1, 1], [], []>} : vector<2x24xbf16>, vector<24x128xbf16>, vector<2x128xf32> -> vector<2x128xf32>
    %47 = arith.addf %39, %46 : vector<2x128xf32>
    %c4 = arith.constant 4 : index
    %c0_38 = arith.constant 0 : index
    %c0_39 = arith.constant 0 : index
    %48 = vector.load %arg5[%c4, %c0_38, %c0_39] : memref<9x2x128xbf16, #tpu.memory_space<vmem>>, vector<1x2x128xbf16>
    %49 = vector.shape_cast %48 : vector<1x2x128xbf16> to vector<2x128xbf16>
    %cst_40 = arith.constant dense<0.000000e+00> : vector<2x24xf32>
    %50 = tpu.matmul %49, %16, %cst_40 {dimension_numbers = #tpu.dot_dimension_numbers<[1], [0], [0], [1], [0, 0, 1, 1], [], []>} : vector<2x128xbf16>, vector<128x24xbf16>, vector<2x24xf32> -> vector<2x24xf32>
    %51 = arith.truncf %50 : vector<2x24xf32> to vector<2x24xbf16>
    %c4_41 = arith.constant 4 : index
    %c0_42 = arith.constant 0 : index
    %c0_43 = arith.constant 0 : index
    %52 = vector.load %arg6[%c4_41, %c0_42, %c0_43] : memref<9x24x128xbf16, #tpu.memory_space<vmem>>, vector<1x24x128xbf16>
    %53 = vector.shape_cast %52 : vector<1x24x128xbf16> to vector<24x128xbf16>
    %cst_44 = arith.constant dense<0.000000e+00> : vector<2x128xf32>
    %54 = tpu.matmul %51, %53, %cst_44 {dimension_numbers = #tpu.dot_dimension_numbers<[1], [0], [0], [1], [0, 0, 1, 1], [], []>} : vector<2x24xbf16>, vector<24x128xbf16>, vector<2x128xf32> -> vector<2x128xf32>
    %55 = arith.addf %47, %54 : vector<2x128xf32>
    %c5 = arith.constant 5 : index
    %c0_45 = arith.constant 0 : index
    %c0_46 = arith.constant 0 : index
    %56 = vector.load %arg5[%c5, %c0_45, %c0_46] : memref<9x2x128xbf16, #tpu.memory_space<vmem>>, vector<1x2x128xbf16>
    %57 = vector.shape_cast %56 : vector<1x2x128xbf16> to vector<2x128xbf16>
    %cst_47 = arith.constant dense<0.000000e+00> : vector<2x24xf32>
    %58 = tpu.matmul %57, %16, %cst_47 {dimension_numbers = #tpu.dot_dimension_numbers<[1], [0], [0], [1], [0, 0, 1, 1], [], []>} : vector<2x128xbf16>, vector<128x24xbf16>, vector<2x24xf32> -> vector<2x24xf32>
    %59 = arith.truncf %58 : vector<2x24xf32> to vector<2x24xbf16>
    %c5_48 = arith.constant 5 : index
    %c0_49 = arith.constant 0 : index
    %c0_50 = arith.constant 0 : index
    %60 = vector.load %arg6[%c5_48, %c0_49, %c0_50] : memref<9x24x128xbf16, #tpu.memory_space<vmem>>, vector<1x24x128xbf16>
    %61 = vector.shape_cast %60 : vector<1x24x128xbf16> to vector<24x128xbf16>
    %cst_51 = arith.constant dense<0.000000e+00> : vector<2x128xf32>
    %62 = tpu.matmul %59, %61, %cst_51 {dimension_numbers = #tpu.dot_dimension_numbers<[1], [0], [0], [1], [0, 0, 1, 1], [], []>} : vector<2x24xbf16>, vector<24x128xbf16>, vector<2x128xf32> -> vector<2x128xf32>
    %63 = arith.addf %55, %62 : vector<2x128xf32>
    %c6 = arith.constant 6 : index
    %c0_52 = arith.constant 0 : index
    %c0_53 = arith.constant 0 : index
    %64 = vector.load %arg5[%c6, %c0_52, %c0_53] : memref<9x2x128xbf16, #tpu.memory_space<vmem>>, vector<1x2x128xbf16>
    %65 = vector.shape_cast %64 : vector<1x2x128xbf16> to vector<2x128xbf16>
    %cst_54 = arith.constant dense<0.000000e+00> : vector<2x24xf32>
    %66 = tpu.matmul %65, %16, %cst_54 {dimension_numbers = #tpu.dot_dimension_numbers<[1], [0], [0], [1], [0, 0, 1, 1], [], []>} : vector<2x128xbf16>, vector<128x24xbf16>, vector<2x24xf32> -> vector<2x24xf32>
    %67 = arith.truncf %66 : vector<2x24xf32> to vector<2x24xbf16>
    %c6_55 = arith.constant 6 : index
    %c0_56 = arith.constant 0 : index
    %c0_57 = arith.constant 0 : index
    %68 = vector.load %arg6[%c6_55, %c0_56, %c0_57] : memref<9x24x128xbf16, #tpu.memory_space<vmem>>, vector<1x24x128xbf16>
    %69 = vector.shape_cast %68 : vector<1x24x128xbf16> to vector<24x128xbf16>
    %cst_58 = arith.constant dense<0.000000e+00> : vector<2x128xf32>
    %70 = tpu.matmul %67, %69, %cst_58 {dimension_numbers = #tpu.dot_dimension_numbers<[1], [0], [0], [1], [0, 0, 1, 1], [], []>} : vector<2x24xbf16>, vector<24x128xbf16>, vector<2x128xf32> -> vector<2x128xf32>
    %71 = arith.addf %63, %70 : vector<2x128xf32>
    %c7 = arith.constant 7 : index
    %c0_59 = arith.constant 0 : index
    %c0_60 = arith.constant 0 : index
    %72 = vector.load %arg5[%c7, %c0_59, %c0_60] : memref<9x2x128xbf16, #tpu.memory_space<vmem>>, vector<1x2x128xbf16>
    %73 = vector.shape_cast %72 : vector<1x2x128xbf16> to vector<2x128xbf16>
    %cst_61 = arith.constant dense<0.000000e+00> : vector<2x24xf32>
    %74 = tpu.matmul %73, %16, %cst_61 {dimension_numbers = #tpu.dot_dimension_numbers<[1], [0], [0], [1], [0, 0, 1, 1], [], []>} : vector<2x128xbf16>, vector<128x24xbf16>, vector<2x24xf32> -> vector<2x24xf32>
    %75 = arith.truncf %74 : vector<2x24xf32> to vector<2x24xbf16>
    %c7_62 = arith.constant 7 : index
    %c0_63 = arith.constant 0 : index
    %c0_64 = arith.constant 0 : index
    %76 = vector.load %arg6[%c7_62, %c0_63, %c0_64] : memref<9x24x128xbf16, #tpu.memory_space<vmem>>, vector<1x24x128xbf16>
    %77 = vector.shape_cast %76 : vector<1x24x128xbf16> to vector<24x128xbf16>
    %cst_65 = arith.constant dense<0.000000e+00> : vector<2x128xf32>
    %78 = tpu.matmul %75, %77, %cst_65 {dimension_numbers = #tpu.dot_dimension_numbers<[1], [0], [0], [1], [0, 0, 1, 1], [], []>} : vector<2x24xbf16>, vector<24x128xbf16>, vector<2x128xf32> -> vector<2x128xf32>
    %79 = arith.addf %71, %78 : vector<2x128xf32>
    %c8 = arith.constant 8 : index
    %c0_66 = arith.constant 0 : index
    %c0_67 = arith.constant 0 : index
    %80 = vector.load %arg5[%c8, %c0_66, %c0_67] : memref<9x2x128xbf16, #tpu.memory_space<vmem>>, vector<1x2x128xbf16>
    %81 = vector.shape_cast %80 : vector<1x2x128xbf16> to vector<2x128xbf16>
    %cst_68 = arith.constant dense<0.000000e+00> : vector<2x24xf32>
    %82 = tpu.matmul %81, %16, %cst_68 {dimension_numbers = #tpu.dot_dimension_numbers<[1], [0], [0], [1], [0, 0, 1, 1], [], []>} : vector<2x128xbf16>, vector<128x24xbf16>, vector<2x24xf32> -> vector<2x24xf32>
    %83 = arith.truncf %82 : vector<2x24xf32> to vector<2x24xbf16>
    %c8_69 = arith.constant 8 : index
    %c0_70 = arith.constant 0 : index
    %c0_71 = arith.constant 0 : index
    %84 = vector.load %arg6[%c8_69, %c0_70, %c0_71] : memref<9x24x128xbf16, #tpu.memory_space<vmem>>, vector<1x24x128xbf16>
    %85 = vector.shape_cast %84 : vector<1x24x128xbf16> to vector<24x128xbf16>
    %cst_72 = arith.constant dense<0.000000e+00> : vector<2x128xf32>
    %86 = tpu.matmul %83, %85, %cst_72 {dimension_numbers = #tpu.dot_dimension_numbers<[1], [0], [0], [1], [0, 0, 1, 1], [], []>} : vector<2x24xbf16>, vector<24x128xbf16>, vector<2x128xf32> -> vector<2x128xf32>
    %87 = arith.addf %79, %86 : vector<2x128xf32>
    %c0_73 = arith.constant 0 : index
    %c0_74 = arith.constant 0 : index
    %88 = vector.load %arg7[%c0_73, %c0_74] : memref<1x128xf32, #tpu.memory_space<vmem>>, vector<1x128xf32>
    %89 = vector.broadcast %88 : vector<1x128xf32> to vector<2x128xf32>
    %90 = arith.mulf %87, %89 : vector<2x128xf32>
    %c0_75 = arith.constant 0 : index
    %c0_76 = arith.constant 0 : index
    %91 = vector.load %arg8[%c0_75, %c0_76] : memref<1x128xf32, #tpu.memory_space<vmem>>, vector<1x128xf32>
    %92 = vector.broadcast %91 : vector<1x128xf32> to vector<2x128xf32>
    %93 = arith.addf %90, %92 : vector<2x128xf32>
    %c0_77 = arith.constant 0 : index
    %c0_78 = arith.constant 0 : index
    %94 = vector.load %arg9[%c0_77, %c0_78] : memref<2x128xf32, #tpu.memory_space<vmem>>, vector<2x128xf32>
    tpu.vector_store %arg9[%c0_77, %c0_78], %93 {strides = array<i32>} : memref<2x128xf32, #tpu.memory_space<vmem>>, vector<2x128xf32>,
    return
  }
  func.func @transform_0(%arg0: i32) -> (i32, i32) {
    %c0_i32 = arith.constant 0 : i32
    %c0_i32_0 = arith.constant 0 : i32
    %c0_i32_1 = arith.constant 0 : i32
    return %c0_i32, %c0_i32_0 : i32, i32
  }
  func.func @transform_1(%arg0: i32) -> (i32, i32) {
    %c0_i32 = arith.constant 0 : i32
    %c0_i32_0 = arith.constant 0 : i32
    %c0_i32_1 = arith.constant 0 : i32
    return %c0_i32, %c0_i32_0 : i32, i32
  }
  func.func @transform_2(%arg0: i32) -> (i32, i32) {
    %c0_i32 = arith.constant 0 : i32
    %c0_i32_0 = arith.constant 0 : i32
    %c0_i32_1 = arith.constant 0 : i32
    return %c0_i32, %c0_i32_0 : i32, i32
  }
  func.func @transform_3(%arg0: i32) -> (i32, i32) {
    %c0_i32 = arith.constant 0 : i32
    %c0_i32_0 = arith.constant 0 : i32
    %c0_i32_1 = arith.constant 0 : i32
    return %c0_i32, %c0_i32_0 : i32, i32
  }
  func.func @transform_4(%arg0: i32) -> (i32, i32, i32) {
    %c0_i32 = arith.constant 0 : i32
    %c0_i32_0 = arith.constant 0 : i32
    %c0_i32_1 = arith.constant 0 : i32
    %c0_i32_2 = arith.constant 0 : i32
    return %c0_i32, %c0_i32_0, %c0_i32_1 : i32, i32, i32
  }
  func.func @transform_5(%arg0: i32) -> (i32, i32, i32) {
    %c0_i32 = arith.constant 0 : i32
    %c0_i32_0 = arith.constant 0 : i32
    %c0_i32_1 = arith.constant 0 : i32
    %c0_i32_2 = arith.constant 0 : i32
    return %c0_i32, %c0_i32_0, %c0_i32_1 : i32, i32, i32
  }
  func.func @transform_6(%arg0: i32) -> (i32, i32) {
    %c0_i32 = arith.constant 0 : i32
    %c0_i32_0 = arith.constant 0 : i32
    %c0_i32_1 = arith.constant 0 : i32
    return %c0_i32, %c0_i32_0 : i32, i32
  }
  func.func @transform_7(%arg0: i32) -> (i32, i32) {
    %c0_i32 = arith.constant 0 : i32
    %c0_i32_0 = arith.constant 0 : i32
    %c0_i32_1 = arith.constant 0 : i32
    return %c0_i32, %c0_i32_0 : i32, i32
  }
  func.func @transform_8(%arg0: i32) -> (i32, i32) {
    %c0_i32 = arith.constant 0 : i32
    %c0_i32_0 = arith.constant 0 : i32
    %c0_i32_1 = arith.constant 0 : i32
    return %c0_i32, %c0_i32_0 : i32, i32
  }
}

</mosaic_0001>

<llo_original>
// kernel: pool_aggregate.1
$region0: #{pool_aggregate.1}
  #allocation0 [shape = 'u32[]', space=smem, size = 0x4, offset = 0x4, fixed_abs, tag = 'smem constant byte address 0x4 - core index']
  #allocation1 [shape = 'u32[72,128]{1,0:T(1,128)}', space=vmem, size = 0x9000, scoped, tag = 'internal scratch']
  %s0 = inlined_call_operand.vmem [shape: bf16[128,36], index: 0, kind: input, shape index: {}]
  %s1 = inlined_call_operand.vmem [shape: bf16[36,24], index: 1, kind: input, shape index: {}]
  %s2 = inlined_call_operand.vmem [shape: f32[1,24], index: 2, kind: input, shape index: {}]
  %s3 = inlined_call_operand.vmem [shape: f32[1,24], index: 3, kind: input, shape index: {}]
  %s4 = inlined_call_operand.vmem [shape: bf16[9,2,128], index: 4, kind: input, shape index: {}]
  %s5 = inlined_call_operand.vmem [shape: bf16[9,24,128], index: 5, kind: input, shape index: {}]
  %s6 = inlined_call_operand.vmem [shape: f32[1,128], index: 6, kind: input, shape index: {}]
  %s7 = inlined_call_operand.vmem [shape: f32[1,128], index: 7, kind: input, shape index: {}]
  %s8 = inlined_call_operand.vmem [shape: f32[2,128], index: 8, kind: output, shape index: {}]
  %s9 = sld [smem:[#allocation0]]
  $region42: #{pool_aggregate.1} parent=0
    _
  %s11 = ssub.s32 1, %s9
  %s12 = scalar_select 0, %s11, %s9
  // Predicated region
  $region2: #{pool_aggregate.1} parent=0 // pred_check
    _
  $region3: #{pool_aggregate.1} parent=0 // pred_check_branch
    %14 = sbr.rel (0) target = $region5
  $region4: #{pool_aggregate.1} parent=0 // pred_region
    _
  $region5: #{pool_aggregate.1} parent=0 // pred_fallthru
    _
  // Predicated region
  $region6: #{pool_aggregate.1} parent=0 // pred_check
    _
  $region7: #{pool_aggregate.1} parent=0 // pred_check_branch
    %16 = sbr.rel (0) target = $region9
  $region8: #{pool_aggregate.1} parent=0 // pred_region
    _
  $region9: #{pool_aggregate.1} parent=0 // pred_fallthru
    _
  // Predicated region
  $region10: #{pool_aggregate.1} parent=0 // pred_check
    _
  $region11: #{pool_aggregate.1} parent=0 // pred_check_branch
    %18 = sbr.rel (0) target = $region13
  $region12: #{pool_aggregate.1} parent=0 // pred_region
    _
  $region13: #{pool_aggregate.1} parent=0 // pred_fallthru
    _
  // Predicated region
  $region14: #{pool_aggregate.1} parent=0 // pred_check
    _
  $region15: #{pool_aggregate.1} parent=0 // pred_check_branch
    %20 = sbr.rel (0) target = $region17
  $region16: #{pool_aggregate.1} parent=0 // pred_region
    _
  $region17: #{pool_aggregate.1} parent=0 // pred_fallthru
    _
  // Predicated region
  $region18: #{pool_aggregate.1} parent=0 // pred_check
    _
  $region19: #{pool_aggregate.1} parent=0 // pred_check_branch
    %22 = sbr.rel (0) target = $region21
  $region20: #{pool_aggregate.1} parent=0 // pred_region
    _
  $region21: #{pool_aggregate.1} parent=0 // pred_fallthru
    _
  // Predicated region
  $region22: #{pool_aggregate.1} parent=0 // pred_check
    _
  $region23: #{pool_aggregate.1} parent=0 // pred_check_branch
    %24 = sbr.rel (0) target = $region25
  $region24: #{pool_aggregate.1} parent=0 // pred_region
    _
  $region25: #{pool_aggregate.1} parent=0 // pred_fallthru
    _
  // Predicated region
  $region26: #{pool_aggregate.1} parent=0 // pred_check
    _
  $region27: #{pool_aggregate.1} parent=0 // pred_check_branch
    %26 = sbr.rel (0) target = $region29
  $region28: #{pool_aggregate.1} parent=0 // pred_region
    _
  $region29: #{pool_aggregate.1} parent=0 // pred_fallthru
    _
  // Predicated region
  $region30: #{pool_aggregate.1} parent=0 // pred_check
    _
  $region31: #{pool_aggregate.1} parent=0 // pred_check_branch
    %28 = sbr.rel (0) target = $region33
  $region32: #{pool_aggregate.1} parent=0 // pred_region
    _
  $region33: #{pool_aggregate.1} parent=0 // pred_fallthru
    _
  %v30 = vld [vmem:[%s0] sm:$0xf]
  %v31 = vld [vmem:[%s0 + $0x4] sm:$0xf]
  %v32 = vld [vmem:[%s0 + $0x8] sm:$0xf]
  %v33 = vld [vmem:[%s0 + $0xc] sm:$0xf]
  %v34 = vld [vmem:[%s0 + $0x10] sm:$0xf]
  %v35 = vld [vmem:[%s0 + $0x14] sm:$0xf]
  %v36 = vld [vmem:[%s0 + $0x18] sm:$0xf]
  %v37 = vld [vmem:[%s0 + $0x1c] sm:$0xf]
  %v38 = vld [vmem:[%s0 + $0x20] sm:$0xf]
  %v39 = vld [vmem:[%s0 + $0x24] sm:$0xf]
  %v40 = vld [vmem:[%s0 + $0x28] sm:$0xf]
  %v41 = vld [vmem:[%s0 + $0x2c] sm:$0xf]
  %v42 = vld [vmem:[%s0 + $0x30] sm:$0xf]
  %v43 = vld [vmem:[%s0 + $0x34] sm:$0xf]
  %v44 = vld [vmem:[%s0 + $0x38] sm:$0xf]
  %v45 = vld [vmem:[%s0 + $0x3c] sm:$0xf]
  %v46 = vld [vmem:[%s1] sm:$0xf]
  %v47 = vld [vmem:[%s1 + $0x4] sm:$0xf]
  %v48 = vld [vmem:[%s1 + $0x8] sm:$0xf]
  %v49 = vld [vmem:[%s1 + $0xc] sm:$0xf]
  %v50 = vld [vmem:[%s1 + $0x10] sm:$0x3]
  %v67 = vunpack.c.l.b16 %v30
  %v68 = vunpack.c.l.b16 %v31
  %v69 = vunpack.c.l.b16 %v32
  %v70 = vunpack.c.l.b16 %v33
  %v71 = vunpack.c.l.b16 %v34
  %v72 = vunpack.c.l.b16 %v35
  %v73 = vunpack.c.l.b16 %v36
  %v74 = vunpack.c.l.b16 %v37
  %v75 = vunpack.c.l.b16 %v38
  %v76 = vunpack.c.l.b16 %v39
  %v77 = vunpack.c.l.b16 %v40
  %v78 = vunpack.c.l.b16 %v41
  %v79 = vunpack.c.l.b16 %v42
  %v80 = vunpack.c.l.b16 %v43
  %v81 = vunpack.c.l.b16 %v44
  %v82 = vunpack.c.l.b16 %v45
  %v83 = vpack.c.b16 %v68, %v67
  %v84 = vpack.c.b16 %v70, %v69
  %v85 = vpack.c.b16 %v72, %v71
  %v86 = vpack.c.b16 %v74, %v73
  %v87 = vpack.c.b16 %v76, %v75
  %v88 = vpack.c.b16 %v78, %v77
  %v89 = vpack.c.b16 %v80, %v79
  %v90 = vpack.c.b16 %v82, %v81
  %v96 = vunpack.c.l.b16 %v46
  %v97 = vunpack.c.l.b16 %v47
  %v98 = vunpack.c.l.b16 %v48
  %v99 = vunpack.c.l.b16 %v49
  %v100 = vunpack.c.l.b16 %v50
  %v101 = vpack.c.b16 %v97, %v96
  %v102 = vpack.c.b16 %v99, %v98
  %v103 = vpack.c.b16 %v100, %v100
  %vm106 = vcmask 293888
  %v108 = vsel %vm106, %v83, 0
  %v111 = vsel %vm106, %v84, 0
  %v114 = vsel %vm106, %v85, 0
  %v117 = vsel %vm106, %v86, 0
  %v120 = vsel %vm106, %v87, 0
  %v123 = vsel %vm106, %v88, 0
  %v126 = vsel %vm106, %v89, 0
  %v129 = vsel %vm106, %v90, 0
  %vm131 = vcmask 1041408
  %v133 = vsel %vm131, %v103, 0
  %135 = vmatpush.bf16.msra.mxu0 0
  %136 = vmatpush.bf16.msra.mxu0 0
  %137 = vmatpush.bf16.msra.mxu0 0
  %138 = vmatpush.bf16.msra.mxu0 0
  %139 = vmatpush.bf16.msra.mxu0 0
  %140 = vmatpush.bf16.msra.mxu0 %v133
  %141 = vmatpush.bf16.msra.mxu0 %v102
  %142 = vmatpush.bf16.msra.mxu0 %v101
  %143 = vmatmul.bf16.gmra.mxu0 %v108
  %v144 = vpop.f32.mrf.mxu0
  %v145 = vadd.f32 0.0, %v144
  %v146 = vpop.f32.mrf.mxu0
  %v147 = vadd.f32 0.0, %v146
  %148 = vmatmul.bf16.gmra.mxu0 %v111
  %v149 = vpop.f32.mrf.mxu0
  %v150 = vadd.f32 0.0, %v149
  %v151 = vpop.f32.mrf.mxu0
  %v152 = vadd.f32 0.0, %v151
  %153 = vmatmul.bf16.gmra.mxu0 %v114
  %v154 = vpop.f32.mrf.mxu0
  %v155 = vadd.f32 0.0, %v154
  %v156 = vpop.f32.mrf.mxu0
  %v157 = vadd.f32 0.0, %v156
  %158 = vmatmul.bf16.gmra.mxu0 %v117
  %v159 = vpop.f32.mrf.mxu0
  %v160 = vadd.f32 0.0, %v159
  %v161 = vpop.f32.mrf.mxu0
  %v162 = vadd.f32 0.0, %v161
  %163 = vmatmul.bf16.gmra.mxu0 %v120
  %v164 = vpop.f32.mrf.mxu0
  %v165 = vadd.f32 0.0, %v164
  %v166 = vpop.f32.mrf.mxu0
  %v167 = vadd.f32 0.0, %v166
  %168 = vmatmul.bf16.gmra.mxu0 %v123
  %v169 = vpop.f32.mrf.mxu0
  %v170 = vadd.f32 0.0, %v169
  %v171 = vpop.f32.mrf.mxu0
  %v172 = vadd.f32 0.0, %v171
  %173 = vmatmul.bf16.gmra.mxu0 %v126
  %v174 = vpop.f32.mrf.mxu0
  %v175 = vadd.f32 0.0, %v174
  %v176 = vpop.f32.mrf.mxu0
  %v177 = vadd.f32 0.0, %v176
  %178 = vmatmul.bf16.gmra.mxu0 %v129
  %v179 = vpop.f32.mrf.mxu0
  %v180 = vadd.f32 0.0, %v179
  %v181 = vpop.f32.mrf.mxu0
  %v182 = vadd.f32 0.0, %v181
  %183 = vdwg.mxu0
  %v184 = vld [vmem:[%s2] sm:$0x1]
  %v186 = vperm.slane %v184, 0
  %v188 = vmul.f32 %v145, %v186
  %v189 = vmul.f32 %v147, %v186
  %v190 = vmul.f32 %v150, %v186
  %v191 = vmul.f32 %v152, %v186
  %v192 = vmul.f32 %v155, %v186
  %v193 = vmul.f32 %v157, %v186
  %v194 = vmul.f32 %v160, %v186
  %v195 = vmul.f32 %v162, %v186
  %v196 = vmul.f32 %v165, %v186
  %v197 = vmul.f32 %v167, %v186
  %v198 = vmul.f32 %v170, %v186
  %v199 = vmul.f32 %v172, %v186
  %v200 = vmul.f32 %v175, %v186
  %v201 = vmul.f32 %v177, %v186
  %v202 = vmul.f32 %v180, %v186
  %v203 = vmul.f32 %v182, %v186
  %v204 = vld [vmem:[%s3] sm:$0x1]
  %v206 = vperm.slane %v204, 0
  %v208 = vadd.f32 %v188, %v206
  %v209 = vadd.f32 %v189, %v206
  %v210 = vadd.f32 %v190, %v206
  %v211 = vadd.f32 %v191, %v206
  %v212 = vadd.f32 %v192, %v206
  %v213 = vadd.f32 %v193, %v206
  %v214 = vadd.f32 %v194, %v206
  %v215 = vadd.f32 %v195, %v206
  %v216 = vadd.f32 %v196, %v206
  %v217 = vadd.f32 %v197, %v206
  %v218 = vadd.f32 %v198, %v206
  %v219 = vadd.f32 %v199, %v206
  %v220 = vadd.f32 %v200, %v206
  %v221 = vadd.f32 %v201, %v206
  %v222 = vadd.f32 %v202, %v206
  %v223 = vadd.f32 %v203, %v206
  %v224 = vsub.f32 0.0, %v208
  %v225 = vsub.f32 0.0, %v209
  %v226 = vsub.f32 0.0, %v210
  %v227 = vsub.f32 0.0, %v211
  %v228 = vsub.f32 0.0, %v212
  %v229 = vsub.f32 0.0, %v213
  %v230 = vsub.f32 0.0, %v214
  %v231 = vsub.f32 0.0, %v215
  %v232 = vsub.f32 0.0, %v216
  %v233 = vsub.f32 0.0, %v217
  %v234 = vsub.f32 0.0, %v218
  %v235 = vsub.f32 0.0, %v219
  %v236 = vsub.f32 0.0, %v220
  %v237 = vsub.f32 0.0, %v221
  %v238 = vsub.f32 0.0, %v222
  %v239 = vsub.f32 0.0, %v223
  %v240 = vmul.f32 %v224, 1.442695
  %v241 = vpow.pop %v240
  %v242 = vmul.f32 %v225, 1.442695
  %v243 = vpow.pop %v242
  %v244 = vmul.f32 %v226, 1.442695
  %v245 = vpow.pop %v244
  %v246 = vmul.f32 %v227, 1.442695
  %v247 = vpow.pop %v246
  %v248 = vmul.f32 %v228, 1.442695
  %v249 = vpow.pop %v248
  %v250 = vmul.f32 %v229, 1.442695
  %v251 = vpow.pop %v250
  %v252 = vmul.f32 %v230, 1.442695
  %v253 = vpow.pop %v252
  %v254 = vmul.f32 %v231, 1.442695
  %v255 = vpow.pop %v254
  %v256 = vmul.f32 %v232, 1.442695
  %v257 = vpow.pop %v256
  %v258 = vmul.f32 %v233, 1.442695
  %v259 = vpow.pop %v258
  %v260 = vmul.f32 %v234, 1.442695
  %v261 = vpow.pop %v260
  %v262 = vmul.f32 %v235, 1.442695
  %v263 = vpow.pop %v262
  %v264 = vmul.f32 %v236, 1.442695
  %v265 = vpow.pop %v264
  %v266 = vmul.f32 %v237, 1.442695
  %v267 = vpow.pop %v266
  %v268 = vmul.f32 %v238, 1.442695
  %v269 = vpow.pop %v268
  %v270 = vmul.f32 %v239, 1.442695
  %v271 = vpow.pop %v270
  %v272 = vadd.f32 %v241, 1.0
  %v273 = vadd.f32 %v243, 1.0
  %v274 = vadd.f32 %v245, 1.0
  %v275 = vadd.f32 %v247, 1.0
  %v276 = vadd.f32 %v249, 1.0
  %v277 = vadd.f32 %v251, 1.0
  %v278 = vadd.f32 %v253, 1.0
  %v279 = vadd.f32 %v255, 1.0
  %v280 = vadd.f32 %v257, 1.0
  %v281 = vadd.f32 %v259, 1.0
  %v282 = vadd.f32 %v261, 1.0
  %v283 = vadd.f32 %v263, 1.0
  %v284 = vadd.f32 %v265, 1.0
  %v285 = vadd.f32 %v267, 1.0
  %v286 = vadd.f32 %v269, 1.0
  %v287 = vadd.f32 %v271, 1.0
  %v288 = vrcp.pop %v272
  %v289 = vrcp.pop %v273
  %v290 = vrcp.pop %v274
  %v291 = vrcp.pop %v275
  %v292 = vrcp.pop %v276
  %v293 = vrcp.pop %v277
  %v294 = vrcp.pop %v278
  %v295 = vrcp.pop %v279
  %v296 = vrcp.pop %v280
  %v297 = vrcp.pop %v281
  %v298 = vrcp.pop %v282
  %v299 = vrcp.pop %v283
  %v300 = vrcp.pop %v284
  %v301 = vrcp.pop %v285
  %v302 = vrcp.pop %v286
  %v303 = vrcp.pop %v287
  %v304 = vmul.f32 %v208, %v288
  %v305 = vmul.f32 %v209, %v289
  %v306 = vmul.f32 %v210, %v290
  %v307 = vmul.f32 %v211, %v291
  %v308 = vmul.f32 %v212, %v292
  %v309 = vmul.f32 %v213, %v293
  %v310 = vmul.f32 %v214, %v294
  %v311 = vmul.f32 %v215, %v295
  %v312 = vmul.f32 %v216, %v296
  %v313 = vmul.f32 %v217, %v297
  %v314 = vmul.f32 %v218, %v298
  %v315 = vmul.f32 %v219, %v299
  %v316 = vmul.f32 %v220, %v300
  %v317 = vmul.f32 %v221, %v301
  %v318 = vmul.f32 %v222, %v302
  %v319 = vmul.f32 %v223, %v303
  %v320 = vpack.c.bf16 %v305, %v304
  %v321 = vpack.c.bf16 %v307, %v306
  %v322 = vpack.c.bf16 %v309, %v308
  %v323 = vpack.c.bf16 %v311, %v310
  %v324 = vpack.c.bf16 %v313, %v312
  %v325 = vpack.c.bf16 %v315, %v314
  %v326 = vpack.c.bf16 %v317, %v316
  %v327 = vpack.c.bf16 %v319, %v318
  %v328 = vld [vmem:[%s4] sm:$0x1]
  %329 = vmatpush.bf16.msra.mxu0 %v327
  %330 = vmatpush.bf16.msra.mxu0 %v326
  %331 = vmatpush.bf16.msra.mxu0 %v325
  %332 = vmatpush.bf16.msra.mxu0 %v324
  %333 = vmatpush.bf16.msra.mxu0 %v323
  %334 = vmatpush.bf16.msra.mxu0 %v322
  %335 = vmatpush.bf16.msra.mxu0 %v321
  %336 = vmatpush.bf16.msra.mxu0 %v320
  %337 = vmatmul.bf16.gmra.mxu0 %v328
  %v338 = vpop.f32.mrf.mxu0
  %v339 = vadd.f32 0.0, %v338
  %v340 = vpop.f32.mrf.mxu0
  %341 = vdwg.mxu0
  %v342 = vpack.c.bf16 %v339, %v339
  %v343 = vld [vmem:[%s5] sm:$0xf]
  %v344 = vld [vmem:[%s5 + $0x4] sm:$0xf]
  %v345 = vld [vmem:[%s5 + $0x8] sm:$0xf]
  %s346 = scalar_lea.vmem %s4, 1
  %v347 = vld [vmem:[%s346] sm:$0x1]
  %348 = vmatpush.bf16.msra.mxu0 %v327
  %349 = vmatpush.bf16.msra.mxu0 %v326
  %350 = vmatpush.bf16.msra.mxu0 %v325
  %351 = vmatpush.bf16.msra.mxu0 %v324
  %352 = vmatpush.bf16.msra.mxu0 %v323
  %353 = vmatpush.bf16.msra.mxu0 %v322
  %354 = vmatpush.bf16.msra.mxu0 %v321
  %355 = vmatpush.bf16.msra.mxu0 %v320
  %356 = vmatmul.bf16.gmra.mxu0 %v347
  %v357 = vpop.f32.mrf.mxu0
  %v358 = vadd.f32 0.0, %v357
  %v359 = vpop.f32.mrf.mxu0
  %360 = vdwg.mxu0
  %v361 = vpack.c.bf16 %v358, %v358
  %s362 = scalar_lea.vmem %s5, 12
  %v363 = vld [vmem:[%s362] sm:$0xf]
  %v364 = vld [vmem:[%s362 + $0x4] sm:$0xf]
  %v365 = vld [vmem:[%s362 + $0x8] sm:$0xf]
  %v369 = vunpack.c.l.b16 %v363
  %v370 = vunpack.c.l.b16 %v364
  %v371 = vunpack.c.l.b16 %v365
  %v372 = vpack.c.b16 %v370, %v369
  %v373 = vpack.c.b16 %v371, %v371
  %vm375 = vcmask 195584
  %v377 = vsel %vm375, %v361, 0
  %vm379 = vcmask 1043456
  %v381 = vsel %vm379, %v373, 0
  %383 = vmatpush.bf16.msra.mxu0 0
  %384 = vmatpush.bf16.msra.mxu0 0
  %385 = vmatpush.bf16.msra.mxu0 0
  %386 = vmatpush.bf16.msra.mxu0 0
  %387 = vmatpush.bf16.msra.mxu0 0
  %388 = vmatpush.bf16.msra.mxu0 0
  %389 = vmatpush.bf16.msra.mxu0 %v381
  %390 = vmatpush.bf16.msra.mxu0 %v372
  %391 = vmatmul.bf16.gmra.mxu0 %v377
  %v392 = vpop.f32.mrf.mxu0
  %v393 = vadd.f32 0.0, %v392
  %v394 = vpop.f32.mrf.mxu0
  %395 = vdwg.mxu0
  %v399 = vunpack.c.l.b16 %v343
  %v400 = vunpack.c.l.b16 %v344
  %v401 = vunpack.c.l.b16 %v345
  %v402 = vpack.c.b16 %v400, %v399
  %v403 = vpack.c.b16 %v401, %v401
  %v406 = vsel %vm375, %v342, 0
  %v409 = vsel %vm379, %v403, 0
  %411 = vmatpush.bf16.msra.mxu0 0
  %412 = vmatpush.bf16.msra.mxu0 0
  %413 = vmatpush.bf16.msra.mxu0 0
  %414 = vmatpush.bf16.msra.mxu0 0
  %415 = vmatpush.bf16.msra.mxu0 0
  %416 = vmatpush.bf16.msra.mxu0 0
  %417 = vmatpush.bf16.msra.mxu0 %v409
  %418 = vmatpush.bf16.msra.mxu0 %v402
  %419 = vmatmul.bf16.gmra.mxu0 %v406
  %v420 = vpop.f32.mrf.mxu0
  %v421 = vadd.f32 %v393, %v420
  %v422 = vpop.f32.mrf.mxu0
  %423 = vdwg.mxu0
  %s424 = scalar_lea.vmem %s4, 2
  %v425 = vld [vmem:[%s424] sm:$0x1]
  %426 = vmatpush.bf16.msra.mxu0 %v327
  %427 = vmatpush.bf16.msra.mxu0 %v326
  %428 = vmatpush.bf16.msra.mxu0 %v325
  %429 = vmatpush.bf16.msra.mxu0 %v324
  %430 = vmatpush.bf16.msra.mxu0 %v323
  %431 = vmatpush.bf16.msra.mxu0 %v322
  %432 = vmatpush.bf16.msra.mxu0 %v321
  %433 = vmatpush.bf16.msra.mxu0 %v320
  %434 = vmatmul.bf16.gmra.mxu0 %v425
  %v435 = vpop.f32.mrf.mxu0
  %v436 = vadd.f32 0.0, %v435
  %v437 = vpop.f32.mrf.mxu0
  %438 = vdwg.mxu0
  %v439 = vpack.c.bf16 %v436, %v436
  %s440 = scalar_lea.vmem %s5, 24
  %v441 = vld [vmem:[%s440] sm:$0xf]
  %v442 = vld [vmem:[%s440 + $0x4] sm:$0xf]
  %v443 = vld [vmem:[%s440 + $0x8] sm:$0xf]
  %v447 = vunpack.c.l.b16 %v441
  %v448 = vunpack.c.l.b16 %v442
  %v449 = vunpack.c.l.b16 %v443
  %v450 = vpack.c.b16 %v448, %v447
  %v451 = vpack.c.b16 %v449, %v449
  %v454 = vsel %vm375, %v439, 0
  %v457 = vsel %vm379, %v451, 0
  %459 = vmatpush.bf16.msra.mxu0 0
  %460 = vmatpush.bf16.msra.mxu0 0
  %461 = vmatpush.bf16.msra.mxu0 0
  %462 = vmatpush.bf16.msra.mxu0 0
  %463 = vmatpush.bf16.msra.mxu0 0
  %464 = vmatpush.bf16.msra.mxu0 0
  %465 = vmatpush.bf16.msra.mxu0 %v457
  %466 = vmatpush.bf16.msra.mxu0 %v450
  %467 = vmatmul.bf16.gmra.mxu0 %v454
  %v468 = vpop.f32.mrf.mxu0
  %v469 = vadd.f32 0.0, %v468
  %v470 = vpop.f32.mrf.mxu0
  %471 = vdwg.mxu0
  %v472 = vadd.f32 %v421, %v469
  %s473 = scalar_lea.vmem %s4, 3
  %v474 = vld [vmem:[%s473] sm:$0x1]
  %475 = vmatpush.bf16.msra.mxu0 %v327
  %476 = vmatpush.bf16.msra.mxu0 %v326
  %477 = vmatpush.bf16.msra.mxu0 %v325
  %478 = vmatpush.bf16.msra.mxu0 %v324
  %479 = vmatpush.bf16.msra.mxu0 %v323
  %480 = vmatpush.bf16.msra.mxu0 %v322
  %481 = vmatpush.bf16.msra.mxu0 %v321
  %482 = vmatpush.bf16.msra.mxu0 %v320
  %483 = vmatmul.bf16.gmra.mxu0 %v474
  %v484 = vpop.f32.mrf.mxu0
  %v485 = vadd.f32 0.0, %v484
  %v486 = vpop.f32.mrf.mxu0
  %487 = vdwg.mxu0
  %v488 = vpack.c.bf16 %v485, %v485
  %s489 = scalar_lea.vmem %s5, 36
  %v490 = vld [vmem:[%s489] sm:$0xf]
  %v491 = vld [vmem:[%s489 + $0x4] sm:$0xf]
  %v492 = vld [vmem:[%s489 + $0x8] sm:$0xf]
  %v496 = vunpack.c.l.b16 %v490
  %v497 = vunpack.c.l.b16 %v491
  %v498 = vunpack.c.l.b16 %v492
  %v499 = vpack.c.b16 %v497, %v496
  %v500 = vpack.c.b16 %v498, %v498
  %v503 = vsel %vm375, %v488, 0
  %v506 = vsel %vm379, %v500, 0
  %508 = vmatpush.bf16.msra.mxu0 0
  %509 = vmatpush.bf16.msra.mxu0 0
  %510 = vmatpush.bf16.msra.mxu0 0
  %511 = vmatpush.bf16.msra.mxu0 0
  %512 = vmatpush.bf16.msra.mxu0 0
  %513 = vmatpush.bf16.msra.mxu0 0
  %514 = vmatpush.bf16.msra.mxu0 %v506
  %515 = vmatpush.bf16.msra.mxu0 %v499
  %516 = vmatmul.bf16.gmra.mxu0 %v503
  %v517 = vpop.f32.mrf.mxu0
  %v518 = vadd.f32 0.0, %v517
  %v519 = vpop.f32.mrf.mxu0
  %520 = vdwg.mxu0
  %v521 = vadd.f32 %v472, %v518
  %s522 = scalar_lea.vmem %s4, 4
  %v523 = vld [vmem:[%s522] sm:$0x1]
  %524 = vmatpush.bf16.msra.mxu0 %v327
  %525 = vmatpush.bf16.msra.mxu0 %v326
  %526 = vmatpush.bf16.msra.mxu0 %v325
  %527 = vmatpush.bf16.msra.mxu0 %v324
  %528 = vmatpush.bf16.msra.mxu0 %v323
  %529 = vmatpush.bf16.msra.mxu0 %v322
  %530 = vmatpush.bf16.msra.mxu0 %v321
  %531 = vmatpush.bf16.msra.mxu0 %v320
  %532 = vmatmul.bf16.gmra.mxu0 %v523
  %v533 = vpop.f32.mrf.mxu0
  %v534 = vadd.f32 0.0, %v533
  %v535 = vpop.f32.mrf.mxu0
  %536 = vdwg.mxu0
  %v537 = vpack.c.bf16 %v534, %v534
  %s538 = scalar_lea.vmem %s5, 48
  %v539 = vld [vmem:[%s538] sm:$0xf]
  %v540 = vld [vmem:[%s538 + $0x4] sm:$0xf]
  %v541 = vld [vmem:[%s538 + $0x8] sm:$0xf]
  %v545 = vunpack.c.l.b16 %v539
  %v546 = vunpack.c.l.b16 %v540
  %v547 = vunpack.c.l.b16 %v541
  %v548 = vpack.c.b16 %v546, %v545
  %v549 = vpack.c.b16 %v547, %v547
  %v552 = vsel %vm375, %v537, 0
  %v555 = vsel %vm379, %v549, 0
  %557 = vmatpush.bf16.msra.mxu0 0
  %558 = vmatpush.bf16.msra.mxu0 0
  %559 = vmatpush.bf16.msra.mxu0 0
  %560 = vmatpush.bf16.msra.mxu0 0
  %561 = vmatpush.bf16.msra.mxu0 0
  %562 = vmatpush.bf16.msra.mxu0 0
  %563 = vmatpush.bf16.msra.mxu0 %v555
  %564 = vmatpush.bf16.msra.mxu0 %v548
  %565 = vmatmul.bf16.gmra.mxu0 %v552
  %v566 = vpop.f32.mrf.mxu0
  %v567 = vadd.f32 0.0, %v566
  %v568 = vpop.f32.mrf.mxu0
  %569 = vdwg.mxu0
  %v570 = vadd.f32 %v521, %v567
  %s571 = scalar_lea.vmem %s4, 5
  %v572 = vld [vmem:[%s571] sm:$0x1]
  %573 = vmatpush.bf16.msra.mxu0 %v327
  %574 = vmatpush.bf16.msra.mxu0 %v326
  %575 = vmatpush.bf16.msra.mxu0 %v325
  %576 = vmatpush.bf16.msra.mxu0 %v324
  %577 = vmatpush.bf16.msra.mxu0 %v323
  %578 = vmatpush.bf16.msra.mxu0 %v322
  %579 = vmatpush.bf16.msra.mxu0 %v321
  %580 = vmatpush.bf16.msra.mxu0 %v320
  %581 = vmatmul.bf16.gmra.mxu0 %v572
  %v582 = vpop.f32.mrf.mxu0
  %v583 = vadd.f32 0.0, %v582
  %v584 = vpop.f32.mrf.mxu0
  %585 = vdwg.mxu0
  %v586 = vpack.c.bf16 %v583, %v583
  %s587 = scalar_lea.vmem %s5, 60
  %v588 = vld [vmem:[%s587] sm:$0xf]
  %v589 = vld [vmem:[%s587 + $0x4] sm:$0xf]
  %v590 = vld [vmem:[%s587 + $0x8] sm:$0xf]
  %v594 = vunpack.c.l.b16 %v588
  %v595 = vunpack.c.l.b16 %v589
  %v596 = vunpack.c.l.b16 %v590
  %v597 = vpack.c.b16 %v595, %v594
  %v598 = vpack.c.b16 %v596, %v596
  %v601 = vsel %vm375, %v586, 0
  %v604 = vsel %vm379, %v598, 0
  %606 = vmatpush.bf16.msra.mxu0 0
  %607 = vmatpush.bf16.msra.mxu0 0
  %608 = vmatpush.bf16.msra.mxu0 0
  %609 = vmatpush.bf16.msra.mxu0 0
  %610 = vmatpush.bf16.msra.mxu0 0
  %611 = vmatpush.bf16.msra.mxu0 0
  %612 = vmatpush.bf16.msra.mxu0 %v604
  %613 = vmatpush.bf16.msra.mxu0 %v597
  %614 = vmatmul.bf16.gmra.mxu0 %v601
  %v615 = vpop.f32.mrf.mxu0
  %v616 = vadd.f32 0.0, %v615
  %v617 = vpop.f32.mrf.mxu0
  %618 = vdwg.mxu0
  %v619 = vadd.f32 %v570, %v616
  %s620 = scalar_lea.vmem %s4, 6
  %v621 = vld [vmem:[%s620] sm:$0x1]
  %622 = vmatpush.bf16.msra.mxu0 %v327
  %623 = vmatpush.bf16.msra.mxu0 %v326
  %624 = vmatpush.bf16.msra.mxu0 %v325
  %625 = vmatpush.bf16.msra.mxu0 %v324
  %626 = vmatpush.bf16.msra.mxu0 %v323
  %627 = vmatpush.bf16.msra.mxu0 %v322
  %628 = vmatpush.bf16.msra.mxu0 %v321
  %629 = vmatpush.bf16.msra.mxu0 %v320
  %630 = vmatmul.bf16.gmra.mxu0 %v621
  %v631 = vpop.f32.mrf.mxu0
  %v632 = vadd.f32 0.0, %v631
  %v633 = vpop.f32.mrf.mxu0
  %634 = vdwg.mxu0
  %v635 = vpack.c.bf16 %v632, %v632
  %s636 = scalar_lea.vmem %s5, 72
  %v637 = vld [vmem:[%s636] sm:$0xf]
  %v638 = vld [vmem:[%s636 + $0x4] sm:$0xf]
  %v639 = vld [vmem:[%s636 + $0x8] sm:$0xf]
  %v643 = vunpack.c.l.b16 %v637
  %v644 = vunpack.c.l.b16 %v638
  %v645 = vunpack.c.l.b16 %v639
  %v646 = vpack.c.b16 %v644, %v643
  %v647 = vpack.c.b16 %v645, %v645
  %v650 = vsel %vm375, %v635, 0
  %v653 = vsel %vm379, %v647, 0
  %655 = vmatpush.bf16.msra.mxu0 0
  %656 = vmatpush.bf16.msra.mxu0 0
  %657 = vmatpush.bf16.msra.mxu0 0
  %658 = vmatpush.bf16.msra.mxu0 0
  %659 = vmatpush.bf16.msra.mxu0 0
  %660 = vmatpush.bf16.msra.mxu0 0
  %661 = vmatpush.bf16.msra.mxu0 %v653
  %662 = vmatpush.bf16.msra.mxu0 %v646
  %663 = vmatmul.bf16.gmra.mxu0 %v650
  %v664 = vpop.f32.mrf.mxu0
  %v665 = vadd.f32 0.0, %v664
  %v666 = vpop.f32.mrf.mxu0
  %667 = vdwg.mxu0
  %v668 = vadd.f32 %v619, %v665
  %s669 = scalar_lea.vmem %s4, 7
  %v670 = vld [vmem:[%s669] sm:$0x1]
  %671 = vmatpush.bf16.msra.mxu0 %v327
  %672 = vmatpush.bf16.msra.mxu0 %v326
  %673 = vmatpush.bf16.msra.mxu0 %v325
  %674 = vmatpush.bf16.msra.mxu0 %v324
  %675 = vmatpush.bf16.msra.mxu0 %v323
  %676 = vmatpush.bf16.msra.mxu0 %v322
  %677 = vmatpush.bf16.msra.mxu0 %v321
  %678 = vmatpush.bf16.msra.mxu0 %v320
  %679 = vmatmul.bf16.gmra.mxu0 %v670
  %v680 = vpop.f32.mrf.mxu0
  %v681 = vadd.f32 0.0, %v680
  %v682 = vpop.f32.mrf.mxu0
  %683 = vdwg.mxu0
  %v684 = vpack.c.bf16 %v681, %v681
  %s685 = scalar_lea.vmem %s5, 84
  %v686 = vld [vmem:[%s685] sm:$0xf]
  %v687 = vld [vmem:[%s685 + $0x4] sm:$0xf]
  %v688 = vld [vmem:[%s685 + $0x8] sm:$0xf]
  %v692 = vunpack.c.l.b16 %v686
  %v693 = vunpack.c.l.b16 %v687
  %v694 = vunpack.c.l.b16 %v688
  %v695 = vpack.c.b16 %v693, %v692
  %v696 = vpack.c.b16 %v694, %v694
  %v699 = vsel %vm375, %v684, 0
  %v702 = vsel %vm379, %v696, 0
  %704 = vmatpush.bf16.msra.mxu0 0
  %705 = vmatpush.bf16.msra.mxu0 0
  %706 = vmatpush.bf16.msra.mxu0 0
  %707 = vmatpush.bf16.msra.mxu0 0
  %708 = vmatpush.bf16.msra.mxu0 0
  %709 = vmatpush.bf16.msra.mxu0 0
  %710 = vmatpush.bf16.msra.mxu0 %v702
  %711 = vmatpush.bf16.msra.mxu0 %v695
  %712 = vmatmul.bf16.gmra.mxu0 %v699
  %v713 = vpop.f32.mrf.mxu0
  %v714 = vadd.f32 0.0, %v713
  %v715 = vpop.f32.mrf.mxu0
  %716 = vdwg.mxu0
  %v717 = vadd.f32 %v668, %v714
  %s718 = scalar_lea.vmem %s4, 8
  %v719 = vld [vmem:[%s718] sm:$0x1]
  %720 = vmatpush.bf16.msra.mxu0 %v327
  %721 = vmatpush.bf16.msra.mxu0 %v326
  %722 = vmatpush.bf16.msra.mxu0 %v325
  %723 = vmatpush.bf16.msra.mxu0 %v324
  %724 = vmatpush.bf16.msra.mxu0 %v323
  %725 = vmatpush.bf16.msra.mxu0 %v322
  %726 = vmatpush.bf16.msra.mxu0 %v321
  %727 = vmatpush.bf16.msra.mxu0 %v320
  %728 = vmatmul.bf16.gmra.mxu0 %v719
  %v729 = vpop.f32.mrf.mxu0
  %v730 = vadd.f32 0.0, %v729
  %v731 = vpop.f32.mrf.mxu0
  %732 = vdwg.mxu0
  %v733 = vpack.c.bf16 %v730, %v730
  %s734 = scalar_lea.vmem %s5, 96
  %v735 = vld [vmem:[%s734] sm:$0xf]
  %v736 = vld [vmem:[%s734 + $0x4] sm:$0xf]
  %v737 = vld [vmem:[%s734 + $0x8] sm:$0xf]
  %v741 = vunpack.c.l.b16 %v735
  %v742 = vunpack.c.l.b16 %v736
  %v743 = vunpack.c.l.b16 %v737
  %v744 = vpack.c.b16 %v742, %v741
  %v745 = vpack.c.b16 %v743, %v743
  %v748 = vsel %vm375, %v733, 0
  %v751 = vsel %vm379, %v745, 0
  %753 = vmatpush.bf16.msra.mxu0 0
  %754 = vmatpush.bf16.msra.mxu0 0
  %755 = vmatpush.bf16.msra.mxu0 0
  %756 = vmatpush.bf16.msra.mxu0 0
  %757 = vmatpush.bf16.msra.mxu0 0
  %758 = vmatpush.bf16.msra.mxu0 0
  %759 = vmatpush.bf16.msra.mxu0 %v751
  %760 = vmatpush.bf16.msra.mxu0 %v744
  %761 = vmatmul.bf16.gmra.mxu0 %v748
  %v762 = vpop.f32.mrf.mxu0
  %v763 = vadd.f32 0.0, %v762
  %v764 = vpop.f32.mrf.mxu0
  %765 = vdwg.mxu0
  %v766 = vadd.f32 %v717, %v763
  %v767 = vld [vmem:[%s6] sm:$0x1]
  %v769 = vperm.slane %v767, 0
  %v771 = vmul.f32 %v766, %v769
  %v772 = vld [vmem:[%s7] sm:$0x1]
  %v774 = vperm.slane %v772, 0
  %v776 = vadd.f32 %v771, %v774
  %777 = vst [vmem:[%s8] sm:$0x3] %v776
  // Predicated region
  $region34: #{pool_aggregate.1} parent=0 // pred_check
    _
  $region35: #{pool_aggregate.1} parent=0 // pred_check_branch
    %779 = sbr.rel (0) target = $region37
  $region36: #{pool_aggregate.1} parent=0 // pred_region
    _
  $region37: #{pool_aggregate.1} parent=0 // pred_fallthru
    _
  // Predicated region
  $region38: #{pool_aggregate.1} parent=0 // pred_check
    _
  $region39: #{pool_aggregate.1} parent=0 // pred_check_branch
    %781 = sbr.rel (0) target = $region41
  $region40: #{pool_aggregate.1} parent=0 // pred_region
    _
  $region41: #{pool_aggregate.1} parent=0 // pred_fallthru
    _

</llo_original>
